<compile_context>
chip_gen: v5e
topology: v5e:2x2
jax: 0.10.0
libtpu: 0.0.40
codegen_flags: <defaults>
</compile_context>

<pallas_src>
import math
import functools

import jax
import jax.numpy as jnp
from jax import lax
from jax.experimental import pallas as pl
from jax.experimental.pallas import tpu as pltpu


# ---------------------------------------------------------------------------
# Kernel bodies
# ---------------------------------------------------------------------------
def _attention_core(q, k, v, wo_t, bo, out_ref, attnw_ref, num_heads):
    """q: (Sq, E) already scaled; k/v: (Sk, E).  Writes out_ref[0], attnw_ref[0]."""
    e = q.shape[-1]
    d = e // num_heads

    ctx_parts = []
    score_sum = None
    # Static (unrolled) loop over heads: per-head slices are static lane slices,
    # each head is a plain 2-D MXU matmul -- no cross-lane relayouts needed.
    for h in range(num_heads):
        sl = slice(h * d, (h + 1) * d)
        qh = q[:, sl]                                   # (Sq, D)
        kh = k[:, sl]                                   # (Sk, D)
        vh = v[:, sl]                                   # (Sk, D)

        # scores = qh @ kh^T without materializing a transpose (contract last dims).
        s = lax.dot_general(qh, kh, (((1,), (1,)), ((), ())),
                            preferred_element_type=jnp.float32)   # (Sq, Sk)
        score_sum = s if score_sum is None else score_sum + s

        # Softmax (f32, max-subtracted).
        m = jnp.max(s, axis=-1, keepdims=True)
        p = jnp.exp(s - m)
        denom = jnp.sum(p, axis=-1, keepdims=True)
        attn = p * pl.reciprocal(denom)   # exact; approx=True would push to EUP
        # TODO(synk): training-mode dropout on `attn` would need pltpu.prng_*
        # (module default dropout=0.0 is a no-op).

        ctx_parts.append(jnp.dot(attn, vh, preferred_element_type=jnp.float32))

    ctx = jnp.concatenate(ctx_parts, axis=-1)            # (Sq, E)

    # Output projection, written straight to the per-batch output block.
    out_ref[0] = jnp.dot(ctx, wo_t, preferred_element_type=jnp.float32) + bo
    # Module's custom SDPA returns *pre-softmax* scores; average over heads.
    attnw_ref[0] = score_sum * (1.0 / num_heads)


def _mha_self_kernel(x_ref, wqkv_ref, bqkv_ref, wo_ref, bo_ref,
                     out_ref, attnw_ref, *, num_heads, scale):
    # x_ref: (1, S, E); wqkv_ref: (E, 3E); bqkv_ref: (1, 3E); wo_ref: (E, E); bo_ref: (1, E)
    e = x_ref.shape[-1]
    x = x_ref[0]                                          # (S, E)
    # Packed, lane-dense (S, 3E) projection: one MXU dot covers q, k and v.
    qkv = jnp.dot(x, wqkv_ref[...], preferred_element_type=jnp.float32) + bqkv_ref[...]
    q = qkv[:, :e] * scale
    k = qkv[:, e:2 * e]
    v = qkv[:, 2 * e:]
    _attention_core(q, k, v, wo_ref[...], bo_ref[...], out_ref, attnw_ref, num_heads)


def _mha_cross_kernel(xq_ref, xk_ref, xv_ref, wqkv_ref, bqkv_ref, wo_ref, bo_ref,
                      out_ref, attnw_ref, *, num_heads, scale):
    # xq_ref: (1, Sq, E); xk_ref/xv_ref: (1, Sk, E)
    e = xq_ref.shape[-1]
    wqkv = wqkv_ref[...]
    bqkv = bqkv_ref[...]
    q = (jnp.dot(xq_ref[0], wqkv[:, :e], preferred_element_type=jnp.float32)
         + bqkv[:, :e]) * scale
    k = (jnp.dot(xk_ref[0], wqkv[:, e:2 * e], preferred_element_type=jnp.float32)
         + bqkv[:, e:2 * e])
    v = (jnp.dot(xv_ref[0], wqkv[:, 2 * e:], preferred_element_type=jnp.float32)
         + bqkv[:, 2 * e:])
    _attention_core(q, k, v, wo_ref[...], bo_ref[...], out_ref, attnw_ref, num_heads)


# ---------------------------------------------------------------------------
# Module forward (one fused pallas_call; only batch-major swapaxes in XLA)
# ---------------------------------------------------------------------------
def multihead_attention_forward(
    query, key, value,
    in_proj_weight, in_proj_bias,
    out_proj_weight, out_proj_bias,
    num_heads,
):
    # query/key/value: (S, B, E), batch_first=False convention.
    tgt_len, bsz, embed_dim = query.shape
    src_len = key.shape[0]
    e = embed_dim
    head_dim = e // num_heads
    scale = 1.0 / math.sqrt(head_dim)

    # Pre-transposed weights so the kernel does x @ W^T as a plain dot.
    wqkv_t = jnp.transpose(in_proj_weight).astype(jnp.float32)     # (E, 3E)
    bqkv = in_proj_bias.reshape(1, 3 * e).astype(jnp.float32)      # (1, 3E)
    wo_t = jnp.transpose(out_proj_weight).astype(jnp.float32)      # (E, E)
    bo = out_proj_bias.reshape(1, e).astype(jnp.float32)           # (1, E)

    # Batch-major layout so per-batch blocks keep full (S, E) in the last two dims.
    q_bse = jnp.swapaxes(query, 0, 1)                              # (B, Sq, E)

    weight_specs = [
        pl.BlockSpec((e, 3 * e), lambda b: (0, 0)),   # resident across the grid
        pl.BlockSpec((1, 3 * e), lambda b: (0, 0)),
        pl.BlockSpec((e, e), lambda b: (0, 0)),
        pl.BlockSpec((1, e), lambda b: (0, 0)),
    ]
    out_shapes = (
        jax.ShapeDtypeStruct((bsz, tgt_len, e), jnp.float32),
        jax.ShapeDtypeStruct((bsz, tgt_len, src_len), jnp.float32),
    )
    out_specs = (
        pl.BlockSpec((1, tgt_len, e), lambda b: (b, 0, 0)),
        pl.BlockSpec((1, tgt_len, src_len), lambda b: (b, 0, 0)),
    )
    cparams = pltpu.CompilerParams(dimension_semantics=("parallel",))

    if (query is key) and (key is value):
        # Self-attention: single packed projection in-kernel.
        kernel = functools.partial(_mha_self_kernel, num_heads=num_heads, scale=scale)
        out_bse, attn_weights = pl.pallas_call(
            kernel,
            out_shape=out_shapes,
            grid=(bsz,),
            in_specs=[pl.BlockSpec((1, tgt_len, e), lambda b: (b, 0, 0))] + weight_specs,
            out_specs=out_specs,
            compiler_params=cparams,
        )(q_bse, wqkv_t, bqkv, wo_t, bo)
    else:
        k_bse = jnp.swapaxes(key, 0, 1)                            # (B, Sk, E)
        v_bse = k_bse if (key is value) else jnp.swapaxes(value, 0, 1)
        kernel = functools.partial(_mha_cross_kernel, num_heads=num_heads, scale=scale)
        out_bse, attn_weights = pl.pallas_call(
            kernel,
            out_shape=out_shapes,
            grid=(bsz,),
            in_specs=[pl.BlockSpec((1, tgt_len, e), lambda b: (b, 0, 0)),
                      pl.BlockSpec((1, src_len, e), lambda b: (b, 0, 0)),
                      pl.BlockSpec((1, src_len, e), lambda b: (b, 0, 0))] + weight_specs,
            out_specs=out_specs,
            compiler_params=cparams,
        )(q_bse, k_bse, v_bse, wqkv_t, bqkv, wo_t, bo)

    attn_output = jnp.swapaxes(out_bse, 0, 1)                      # (Sq, B, E)
    # attn_weights already (B, Sq, Sk) = head-averaged pre-softmax scores.
    return attn_output, attn_weights


# ---------------------------------------------------------------------------
# Pure-JAX reference (for correctness check)
# ---------------------------------------------------------------------------
def reference_forward(query, key, value, in_w, in_b, out_w, out_b, num_heads):
    tgt_len, bsz, E = query.shape
    src_len = key.shape[0]
    d = E // num_heads
    w_q, w_k, w_v = in_w[:E], in_w[E:2 * E], in_w[2 * E:]
    b_q, b_k, b_v = in_b[:E], in_b[E:2 * E], in_b[2 * E:]
    q = query @ w_q.T + b_q
    k = key @ w_k.T + b_k
    v = value @ w_v.T + b_v
    q = q.reshape(tgt_len, bsz * num_heads, d).transpose(1, 0, 2) / math.sqrt(d)
    k = k.reshape(src_len, bsz * num_heads, d).transpose(1, 0, 2)
    v = v.reshape(src_len, bsz * num_heads, d).transpose(1, 0, 2)
    scores = jnp.einsum("bqd,bkd->bqk", q, k)
    attn = jax.nn.softmax(scores, axis=-1)
    out = jnp.einsum("bqk,bkd->bqd", attn, v)
    out = out.transpose(1, 0, 2).reshape(tgt_len, bsz, E)
    out = out @ out_w.T + out_b
    w = scores.reshape(bsz, num_heads, tgt_len, src_len).sum(axis=1) / num_heads
    return out, w


# ---------------------------------------------------------------------------
if __name__ == "__main__":
    S, B, E, H = 8, 2, 32, 4           # seq, batch, embed_dim, num_heads

    root = jax.random.PRNGKey(0)
    k_x, k_w, k_o, k_k, k_v = jax.random.split(root, 5)

    # Deterministic parameter init (shapes from MultiheadAttention.__init__):
    #   in_proj_weight: (3E, E) xavier_uniform; in_proj_bias: (3E,) zeros
    #   out_proj.weight: (E, E); out_proj.bias: (E,) zeros
    bound_in = math.sqrt(6.0 / (3 * E + E))
    in_proj_weight = jax.random.uniform(k_w, (3 * E, E), jnp.float32, -bound_in, bound_in)
    in_proj_bias = jnp.zeros((3 * E,), jnp.float32)
    bound_out = 1.0 / math.sqrt(E)
    out_proj_weight = jax.random.uniform(k_o, (E, E), jnp.float32, -bound_out, bound_out)
    out_proj_bias = jnp.zeros((E,), jnp.float32)

    # ---- self-attention (query is key is value), layout (S, B, E) ----------
    x = jax.random.normal(k_x, (S, B, E), jnp.float32)
    attn_out, attn_w = multihead_attention_forward(
        x, x, x, in_proj_weight, in_proj_bias, out_proj_weight, out_proj_bias, H
    )
    attn_out = jax.block_until_ready(attn_out)
    attn_w = jax.block_until_ready(attn_w)

    ref_out, ref_w = reference_forward(
        x, x, x, in_proj_weight, in_proj_bias, out_proj_weight, out_proj_bias, H
    )
    assert attn_out.shape == (S, B, E)
    assert attn_w.shape == (B, S, S)
    assert jnp.allclose(attn_out, ref_out, atol=1e-4, rtol=1e-4)
    assert jnp.allclose(attn_w, ref_w, atol=1e-4, rtol=1e-4)

    # ---- cross-attention (distinct key/value, longer source length) --------
    Skv = 16
    key = jax.random.normal(k_k, (Skv, B, E), jnp.float32)
    val = jax.random.normal(k_v, (Skv, B, E), jnp.float32)
    attn_out2, attn_w2 = multihead_attention_forward(
        x, key, val, in_proj_weight, in_proj_bias, out_proj_weight, out_proj_bias, H
    )
    attn_out2 = jax.block_until_ready(attn_out2)
    attn_w2 = jax.block_until_ready(attn_w2)

    ref_out2, ref_w2 = reference_forward(
        x, key, val, in_proj_weight, in_proj_bias, out_proj_weight, out_proj_bias, H
    )
    assert attn_out2.shape == (S, B, E)
    assert attn_w2.shape == (B, S, Skv)
    assert jnp.allclose(attn_out2, ref_out2, atol=1e-4, rtol=1e-4)
    assert jnp.allclose(attn_w2, ref_w2, atol=1e-4, rtol=1e-4)

    print("KERNEL_OK")
</pallas_src>

<mosaic_0001>
module attributes {stable_mosaic.version = 11 : i64} {
  func.func @_mha_self_kernel(%arg0: i32, %arg1: memref<1x8x32xf32, #tpu.memory_space<vmem>>, %arg2: memref<32x96xf32, #tpu.memory_space<vmem>>, %arg3: memref<1x96xf32, #tpu.memory_space<vmem>>, %arg4: memref<32x32xf32, #tpu.memory_space<vmem>>, %arg5: memref<1x32xf32, #tpu.memory_space<vmem>>, %arg6: memref<1x8x32xf32, #tpu.memory_space<vmem>>, %arg7: memref<1x8x8xf32, #tpu.memory_space<vmem>>) attributes {dimension_semantics = [#tpu.dimension_semantics<parallel>], iteration_bounds = array<i64: 2>, scalar_prefetch = 0 : i64, scratch_operands = 0 : i64, tpu.core_type = #tpu.core_type<tc>, window_params = [{transform_indices = @transform_0, window_bounds = array<i64: 1, 8, 32>}, {pipeline_mode = #tpu.pipeline_mode<synchronous>, transform_indices = @transform_1, window_bounds = array<i64: 32, 96>}, {pipeline_mode = #tpu.pipeline_mode<synchronous>, transform_indices = @transform_2, window_bounds = array<i64: 1, 96>}, {pipeline_mode = #tpu.pipeline_mode<synchronous>, transform_indices = @transform_3, window_bounds = array<i64: 32, 32>}, {pipeline_mode = #tpu.pipeline_mode<synchronous>, transform_indices = @transform_4, window_bounds = array<i64: 1, 32>}, {transform_indices = @transform_5, window_bounds = array<i64: 1, 8, 32>}, {transform_indices = @transform_6, window_bounds = array<i64: 1, 8, 8>}]} {
    %c0 = arith.constant 0 : index
    %c0_0 = arith.constant 0 : index
    %c0_1 = arith.constant 0 : index
    %0 = vector.load %arg1[%c0, %c0_0, %c0_1] : memref<1x8x32xf32, #tpu.memory_space<vmem>>, vector<1x8x32xf32>
    %1 = vector.shape_cast %0 : vector<1x8x32xf32> to vector<8x32xf32>
    %c0_2 = arith.constant 0 : index
    %c0_3 = arith.constant 0 : index
    %2 = vector.load %arg2[%c0_2, %c0_3] : memref<32x96xf32, #tpu.memory_space<vmem>>, vector<32x96xf32>
    %cst = arith.constant dense<0.000000e+00> : vector<8x96xf32>
    %3 = tpu.matmul %1, %2, %cst {dimension_numbers = #tpu.dot_dimension_numbers<[1], [0], [0], [1], [0, 0, 1, 1], [], []>} : vector<8x32xf32>, vector<32x96xf32>, vector<8x96xf32> -> vector<8x96xf32>
    %c0_4 = arith.constant 0 : index
    %c0_5 = arith.constant 0 : index
    %4 = vector.load %arg3[%c0_4, %c0_5] : memref<1x96xf32, #tpu.memory_space<vmem>>, vector<1x96xf32>
    %5 = vector.broadcast %4 : vector<1x96xf32> to vector<8x96xf32>
    %6 = arith.addf %3, %5 : vector<8x96xf32>
    %7 = vector.extract_strided_slice %6 {offsets = [0, 0], sizes = [8, 32], strides = [1, 1]} : vector<8x96xf32> to vector<8x32xf32>
    %cst_6 = arith.constant 0.353553385 : f32
    %8 = vector.broadcast %cst_6 : f32 to vector<8x32xf32>
    %9 = arith.mulf %7, %8 : vector<8x32xf32>
    %10 = vector.extract_strided_slice %6 {offsets = [0, 32], sizes = [8, 32], strides = [1, 1]} : vector<8x96xf32> to vector<8x32xf32>
    %11 = vector.extract_strided_slice %6 {offsets = [0, 64], sizes = [8, 32], strides = [1, 1]} : vector<8x96xf32> to vector<8x32xf32>
    %c0_7 = arith.constant 0 : index
    %c0_8 = arith.constant 0 : index
    %12 = vector.load %arg4[%c0_7, %c0_8] : memref<32x32xf32, #tpu.memory_space<vmem>>, vector<32x32xf32>
    %c0_9 = arith.constant 0 : index
    %c0_10 = arith.constant 0 : index
    %13 = vector.load %arg5[%c0_9, %c0_10] : memref<1x32xf32, #tpu.memory_space<vmem>>, vector<1x32xf32>
    %14 = vector.extract_strided_slice %9 {offsets = [0, 0], sizes = [8, 8], strides = [1, 1]} : vector<8x32xf32> to vector<8x8xf32>
    %15 = vector.extract_strided_slice %10 {offsets = [0, 0], sizes = [8, 8], strides = [1, 1]} : vector<8x32xf32> to vector<8x8xf32>
    %16 = vector.extract_strided_slice %11 {offsets = [0, 0], sizes = [8, 8], strides = [1, 1]} : vector<8x32xf32> to vector<8x8xf32>
    %cst_11 = arith.constant dense<0.000000e+00> : vector<8x8xf32>
    %17 = tpu.matmul %14, %15, %cst_11 {dimension_numbers = #tpu.dot_dimension_numbers<[1], [1], [0], [0], [0, 0, 1, 0], [], []>} : vector<8x8xf32>, vector<8x8xf32>, vector<8x8xf32> -> vector<8x8xf32>
    %cst_12 = arith.constant dense<0xFF800000> : vector<8xf32>
    %18 = vector.multi_reduction <maximumf>, %17, %cst_12 [1] : vector<8x8xf32> to vector<8xf32>
    %19 = vector.shape_cast %18 : vector<8xf32> to vector<8x1xf32>
    %20 = vector.broadcast %19 : vector<8x1xf32> to vector<8x8xf32>
    %21 = arith.subf %17, %20 : vector<8x8xf32>
    %22 = math.exp %21 : vector<8x8xf32>
    %cst_13 = arith.constant dense<0.000000e+00> : vector<8xf32>
    %23 = vector.multi_reduction <add>, %22, %cst_13 [1] : vector<8x8xf32> to vector<8xf32>
    %24 = vector.shape_cast %23 : vector<8xf32> to vector<8x1xf32>
    %25 = tpu.reciprocal %24 : vector<8x1xf32> -> vector<8x1xf32>
    %26 = vector.broadcast %25 : vector<8x1xf32> to vector<8x8xf32>
    %27 = arith.mulf %22, %26 : vector<8x8xf32>
    %cst_14 = arith.constant dense<0.000000e+00> : vector<8x8xf32>
    %28 = tpu.matmul %27, %16, %cst_14 {dimension_numbers = #tpu.dot_dimension_numbers<[1], [0], [0], [1], [0, 0, 1, 1], [], []>} : vector<8x8xf32>, vector<8x8xf32>, vector<8x8xf32> -> vector<8x8xf32>
    %29 = vector.extract_strided_slice %9 {offsets = [0, 8], sizes = [8, 8], strides = [1, 1]} : vector<8x32xf32> to vector<8x8xf32>
    %30 = vector.extract_strided_slice %10 {offsets = [0, 8], sizes = [8, 8], strides = [1, 1]} : vector<8x32xf32> to vector<8x8xf32>
    %31 = vector.extract_strided_slice %11 {offsets = [0, 8], sizes = [8, 8], strides = [1, 1]} : vector<8x32xf32> to vector<8x8xf32>
    %cst_15 = arith.constant dense<0.000000e+00> : vector<8x8xf32>
    %32 = tpu.matmul %29, %30, %cst_15 {dimension_numbers = #tpu.dot_dimension_numbers<[1], [1], [0], [0], [0, 0, 1, 0], [], []>} : vector<8x8xf32>, vector<8x8xf32>, vector<8x8xf32> -> vector<8x8xf32>
    %33 = arith.addf %17, %32 : vector<8x8xf32>
    %cst_16 = arith.constant dense<0xFF800000> : vector<8xf32>
    %34 = vector.multi_reduction <maximumf>, %32, %cst_16 [1] : vector<8x8xf32> to vector<8xf32>
    %35 = vector.shape_cast %34 : vector<8xf32> to vector<8x1xf32>
    %36 = vector.broadcast %35 : vector<8x1xf32> to vector<8x8xf32>
    %37 = arith.subf %32, %36 : vector<8x8xf32>
    %38 = math.exp %37 : vector<8x8xf32>
    %cst_17 = arith.constant dense<0.000000e+00> : vector<8xf32>
    %39 = vector.multi_reduction <add>, %38, %cst_17 [1] : vector<8x8xf32> to vector<8xf32>
    %40 = vector.shape_cast %39 : vector<8xf32> to vector<8x1xf32>
    %41 = tpu.reciprocal %40 : vector<8x1xf32> -> vector<8x1xf32>
    %42 = vector.broadcast %41 : vector<8x1xf32> to vector<8x8xf32>
    %43 = arith.mulf %38, %42 : vector<8x8xf32>
    %cst_18 = arith.constant dense<0.000000e+00> : vector<8x8xf32>
    %44 = tpu.matmul %43, %31, %cst_18 {dimension_numbers = #tpu.dot_dimension_numbers<[1], [0], [0], [1], [0, 0, 1, 1], [], []>} : vector<8x8xf32>, vector<8x8xf32>, vector<8x8xf32> -> vector<8x8xf32>
    %45 = vector.extract_strided_slice %9 {offsets = [0, 16], sizes = [8, 8], strides = [1, 1]} : vector<8x32xf32> to vector<8x8xf32>
    %46 = vector.extract_strided_slice %10 {offsets = [0, 16], sizes = [8, 8], strides = [1, 1]} : vector<8x32xf32> to vector<8x8xf32>
    %47 = vector.extract_strided_slice %11 {offsets = [0, 16], sizes = [8, 8], strides = [1, 1]} : vector<8x32xf32> to vector<8x8xf32>
    %cst_19 = arith.constant dense<0.000000e+00> : vector<8x8xf32>
    %48 = tpu.matmul %45, %46, %cst_19 {dimension_numbers = #tpu.dot_dimension_numbers<[1], [1], [0], [0], [0, 0, 1, 0], [], []>} : vector<8x8xf32>, vector<8x8xf32>, vector<8x8xf32> -> vector<8x8xf32>
    %49 = arith.addf %33, %48 : vector<8x8xf32>
    %cst_20 = arith.constant dense<0xFF800000> : vector<8xf32>
    %50 = vector.multi_reduction <maximumf>, %48, %cst_20 [1] : vector<8x8xf32> to vector<8xf32>
    %51 = vector.shape_cast %50 : vector<8xf32> to vector<8x1xf32>
    %52 = vector.broadcast %51 : vector<8x1xf32> to vector<8x8xf32>
    %53 = arith.subf %48, %52 : vector<8x8xf32>
    %54 = math.exp %53 : vector<8x8xf32>
    %cst_21 = arith.constant dense<0.000000e+00> : vector<8xf32>
    %55 = vector.multi_reduction <add>, %54, %cst_21 [1] : vector<8x8xf32> to vector<8xf32>
    %56 = vector.shape_cast %55 : vector<8xf32> to vector<8x1xf32>
    %57 = tpu.reciprocal %56 : vector<8x1xf32> -> vector<8x1xf32>
    %58 = vector.broadcast %57 : vector<8x1xf32> to vector<8x8xf32>
    %59 = arith.mulf %54, %58 : vector<8x8xf32>
    %cst_22 = arith.constant dense<0.000000e+00> : vector<8x8xf32>
    %60 = tpu.matmul %59, %47, %cst_22 {dimension_numbers = #tpu.dot_dimension_numbers<[1], [0], [0], [1], [0, 0, 1, 1], [], []>} : vector<8x8xf32>, vector<8x8xf32>, vector<8x8xf32> -> vector<8x8xf32>
    %61 = vector.extract_strided_slice %9 {offsets = [0, 24], sizes = [8, 8], strides = [1, 1]} : vector<8x32xf32> to vector<8x8xf32>
    %62 = vector.extract_strided_slice %10 {offsets = [0, 24], sizes = [8, 8], strides = [1, 1]} : vector<8x32xf32> to vector<8x8xf32>
    %63 = vector.extract_strided_slice %11 {offsets = [0, 24], sizes = [8, 8], strides = [1, 1]} : vector<8x32xf32> to vector<8x8xf32>
    %cst_23 = arith.constant dense<0.000000e+00> : vector<8x8xf32>
    %64 = tpu.matmul %61, %62, %cst_23 {dimension_numbers = #tpu.dot_dimension_numbers<[1], [1], [0], [0], [0, 0, 1, 0], [], []>} : vector<8x8xf32>, vector<8x8xf32>, vector<8x8xf32> -> vector<8x8xf32>
    %65 = arith.addf %49, %64 : vector<8x8xf32>
    %cst_24 = arith.constant dense<0xFF800000> : vector<8xf32>
    %66 = vector.multi_reduction <maximumf>, %64, %cst_24 [1] : vector<8x8xf32> to vector<8xf32>
    %67 = vector.shape_cast %66 : vector<8xf32> to vector<8x1xf32>
    %68 = vector.broadcast %67 : vector<8x1xf32> to vector<8x8xf32>
    %69 = arith.subf %64, %68 : vector<8x8xf32>
    %70 = math.exp %69 : vector<8x8xf32>
    %cst_25 = arith.constant dense<0.000000e+00> : vector<8xf32>
    %71 = vector.multi_reduction <add>, %70, %cst_25 [1] : vector<8x8xf32> to vector<8xf32>
    %72 = vector.shape_cast %71 : vector<8xf32> to vector<8x1xf32>
    %73 = tpu.reciprocal %72 : vector<8x1xf32> -> vector<8x1xf32>
    %74 = vector.broadcast %73 : vector<8x1xf32> to vector<8x8xf32>
    %75 = arith.mulf %70, %74 : vector<8x8xf32>
    %cst_26 = arith.constant dense<0.000000e+00> : vector<8x8xf32>
    %76 = tpu.matmul %75, %63, %cst_26 {dimension_numbers = #tpu.dot_dimension_numbers<[1], [0], [0], [1], [0, 0, 1, 1], [], []>} : vector<8x8xf32>, vector<8x8xf32>, vector<8x8xf32> -> vector<8x8xf32>
    %77 = tpu.concatenate %28, %44, %60, %76 in 1 : vector<8x8xf32>, vector<8x8xf32>, vector<8x8xf32>, vector<8x8xf32> -> vector<8x32xf32>
    %cst_27 = arith.constant dense<0.000000e+00> : vector<8x32xf32>
    %78 = tpu.matmul %77, %12, %cst_27 {dimension_numbers = #tpu.dot_dimension_numbers<[1], [0], [0], [1], [0, 0, 1, 1], [], []>} : vector<8x32xf32>, vector<32x32xf32>, vector<8x32xf32> -> vector<8x32xf32>
    %79 = vector.broadcast %13 : vector<1x32xf32> to vector<8x32xf32>
    %80 = arith.addf %78, %79 : vector<8x32xf32>
    %c0_28 = arith.constant 0 : index
    %c0_29 = arith.constant 0 : index
    %c0_30 = arith.constant 0 : index
    %81 = vector.load %arg6[%c0_28, %c0_29, %c0_30] : memref<1x8x32xf32, #tpu.memory_space<vmem>>, vector<1x8x32xf32>
    %82 = vector.shape_cast %81 : vector<1x8x32xf32> to vector<8x32xf32>
    %83 = vector.shape_cast %80 : vector<8x32xf32> to vector<1x8x32xf32>
    tpu.vector_store %arg6[%c0_28, %c0_29, %c0_30], %83 {strides = array<i32>} : memref<1x8x32xf32, #tpu.memory_space<vmem>>, vector<1x8x32xf32>,
    %cst_31 = arith.constant 2.500000e-01 : f32
    %84 = vector.broadcast %cst_31 : f32 to vector<8x8xf32>
    %85 = arith.mulf %65, %84 : vector<8x8xf32>
    %c0_32 = arith.constant 0 : index
    %c0_33 = arith.constant 0 : index
    %c0_34 = arith.constant 0 : index
    %86 = vector.load %arg7[%c0_32, %c0_33, %c0_34] : memref<1x8x8xf32, #tpu.memory_space<vmem>>, vector<1x8x8xf32>
    %87 = vector.shape_cast %86 : vector<1x8x8xf32> to vector<8x8xf32>
    %88 = vector.shape_cast %85 : vector<8x8xf32> to vector<1x8x8xf32>
    tpu.vector_store %arg7[%c0_32, %c0_33, %c0_34], %88 {strides = array<i32>} : memref<1x8x8xf32, #tpu.memory_space<vmem>>, vector<1x8x8xf32>,
    return
  }
  func.func @transform_0(%arg0: i32) -> (i32, i32, i32) {
    %c0_i32 = arith.constant 0 : i32
    %c0_i32_0 = arith.constant 0 : i32
    %c0_i32_1 = arith.constant 0 : i32
    return %arg0, %c0_i32, %c0_i32_0 : i32, i32, i32
  }
  func.func @transform_1(%arg0: i32) -> (i32, i32) {
    %c0_i32 = arith.constant 0 : i32
    %c0_i32_0 = arith.constant 0 : i32
    %c0_i32_1 = arith.constant 0 : i32
    return %c0_i32, %c0_i32_0 : i32, i32
  }
  func.func @transform_2(%arg0: i32) -> (i32, i32) {
    %c0_i32 = arith.constant 0 : i32
    %c0_i32_0 = arith.constant 0 : i32
    %c0_i32_1 = arith.constant 0 : i32
    return %c0_i32, %c0_i32_0 : i32, i32
  }
  func.func @transform_3(%arg0: i32) -> (i32, i32) {
    %c0_i32 = arith.constant 0 : i32
    %c0_i32_0 = arith.constant 0 : i32
    %c0_i32_1 = arith.constant 0 : i32
    return %c0_i32, %c0_i32_0 : i32, i32
  }
  func.func @transform_4(%arg0: i32) -> (i32, i32) {
    %c0_i32 = arith.constant 0 : i32
    %c0_i32_0 = arith.constant 0 : i32
    %c0_i32_1 = arith.constant 0 : i32
    return %c0_i32, %c0_i32_0 : i32, i32
  }
  func.func @transform_5(%arg0: i32) -> (i32, i32, i32) {
    %c0_i32 = arith.constant 0 : i32
    %c0_i32_0 = arith.constant 0 : i32
    %c0_i32_1 = arith.constant 0 : i32
    return %arg0, %c0_i32, %c0_i32_0 : i32, i32, i32
  }
  func.func @transform_6(%arg0: i32) -> (i32, i32, i32) {
    %c0_i32 = arith.constant 0 : i32
    %c0_i32_0 = arith.constant 0 : i32
    %c0_i32_1 = arith.constant 0 : i32
    return %arg0, %c0_i32, %c0_i32_0 : i32, i32, i32
  }
}

</mosaic_0001>

<llo_original>
// kernel: tpu_custom_call.1
$region0: #{tpu_custom_call.1}
  #allocation0 [shape = 'u32[]', space=smem, size = 0x4, offset = 0x4, fixed_abs, tag = 'smem constant byte address 0x4 - core index']
  #allocation1 [shape = 'u32[72,128]{1,0:T(1,128)}', space=vmem, size = 0x9000, scoped, tag = 'internal scratch']
  %s0 = inlined_call_operand.hbm [shape: f32[2,8,32], index: 0, kind: input, shape index: {}]
  %s1 = inlined_call_operand.hbm [shape: f32[32,96], index: 1, kind: input, shape index: {}]
  %s2 = inlined_call_operand.vmem [shape: f32[1,96], index: 2, kind: input, shape index: {}]
  %s3 = inlined_call_operand.hbm [shape: f32[32,32], index: 3, kind: input, shape index: {}]
  %s4 = inlined_call_operand.vmem [shape: f32[1,32], index: 4, kind: input, shape index: {}]
  %s5 = inlined_call_operand.hbm [shape: f32[2,8,32], index: 5, kind: output, shape index: {0}]
  %s6 = inlined_call_operand.hbm [shape: f32[2,8,8], index: 6, kind: output, shape index: {1}]
  %7 = xla_tuple %s5, %s6
  %s8 = sld [smem:[#allocation0]]
  $region73: #{tpu_custom_call.1} parent=0
    _
  %s10 = ssub.s32 1, %s8
  %s11 = scalar_select 0, %s10, %s8
  $region1: #{tpu_custom_call.1} parent=0
    #allocation2 [shape = 'u8[8192]{0}', space=vmem, size = 0x2000, scoped, tag = 'input window, operand 0']
    #allocation3 [shape = 's32[2]{0}', space=sflag, size = 0x8, scoped, tag = 'scoped memory for tpu_custom_call.1']
    #allocation4 [shape = 's32[2]{0}', space=sflag, size = 0x8, scoped, tag = 'scoped memory for tpu_custom_call.1']
    #allocation5 [shape = 'u8[16384]{0}', space=vmem, size = 0x4000, scoped, tag = 'input window, operand 1, single buffered']
    #allocation6 [shape = 's32[1]{0}', space=sflag, size = 0x4, scoped, tag = 'scoped memory for tpu_custom_call.1']
    #allocation7 [shape = 'u8[16384]{0}', space=vmem, size = 0x4000, scoped, tag = 'input window, operand 3, single buffered']
    #allocation8 [shape = 'u8[8192]{0}', space=vmem, size = 0x2000, scoped, tag = 'output window, operand 0']
    #allocation9 [shape = 'u8[8192]{0}', space=vmem, size = 0x2000, scoped, tag = 'output window, operand 1']
    #allocation10 [shape = 's32[2]{0}', space=sflag, size = 0x8, scoped, tag = 'scoped memory for tpu_custom_call.1']
    %12 = vsyncpa [#allocation3], 0
    %s13 = scalar_lea.sflag [#allocation3], 1
    %14 = vsyncpa %s13, 0
    %15 = vsyncpa [#allocation6], 0
    %16 = vsyncpa [#allocation4], 0
    %s17 = scalar_lea.sflag [#allocation4], 1
    %18 = vsyncpa %s17, 0
    %19 = vsyncpa [#allocation10], 0
    %s20 = scalar_lea.sflag [#allocation10], 1
    %21 = vsyncpa %s20, 0
    loop: start=0, step=1, limit=4
    $region2: #{tpu_custom_call.1} parent=1 // loop_pre_header
      _
    $region3: #{tpu_custom_call.1} parent=1 // loop_header
      %s23 = sphi 0, %s27
      %p24 = scmp.ge.s32.totalorder %s23, 4
      %s33 = sphi 0, %s35
      %s36 = sphi 0, %s33
      %s37 = sphi 0, %s36
      %s53 = sphi 0, %s37
      %s57 = sphi 0, %s57
      %s59 = sphi 0, %s57
      %s60 = sphi 0, %s59
      %s74 = sphi 0, %s60
      %s78 = sphi 0, %s78
      %s80 = sphi 0, %s78
      %s81 = sphi 0, %s80
      %s95 = sphi 0, %s81
      %s99 = sphi 0, %s99
      %s101 = sphi 0, %s99
      %s102 = sphi 0, %s101
      %s116 = sphi 0, %s102
      %s120 = sphi 0, %s120
      %s122 = sphi 0, %s120
      %s123 = sphi 0, %s122
      %s137 = sphi 0, %s123
      %s143 = sphi 0, %s145
      %s146 = sphi 0, %s143
      %s147 = sphi 0, %s146
      %s163 = sphi 0, %s147
      %s169 = sphi 0, %s171
      %s172 = sphi 0, %s169
      %s173 = sphi 0, %s172
      %s189 = sphi 0, %s173
    $region4: #{tpu_custom_call.1} parent=1 // loop_header_branch
      %26 = sbr.rel (%p24) target = $region8
    $region5: #{tpu_custom_call.1} parent=1 // loop_body
      %s28 = ssub.s32 %s23, 1
      %s29 = ssub.s32 %s23, 2
      %s30 = sadd.s32 %s23, 1
      %s31 = ssub.s32 %s23, %s30
      %p32 = scmp.eq.s32.totalorder %s31, 0
      %s34 = sadd.s32 %s33, 1
      %s35 = scalar_select %p32, %s33, %s34
      %p38 = pneg %p32
      %p39 = scmp.eq.s32.totalorder %s23, 1
      %p40 = por %p38, %p39
      %p41 = scmp.ne.s32.totalorder %s33, %s36
      %p42 = scmp.eq.s32.totalorder %s23, 0
      %p43 = por %p41, %p42
      %p44 = scmp.ne.s32.totalorder %s33, %s36
      %p45 = scmp.eq.s32.totalorder %s28, 1
      %p46 = por %p44, %p45
      %p47 = scmp.ne.s32.totalorder %s36, %s37
      %p48 = scmp.eq.s32.totalorder %s28, 0
      %p49 = por %p47, %p48
      %p50 = scmp.ne.s32.totalorder %s36, %s37
      %p51 = scmp.eq.s32.totalorder %s29, 1
      %p52 = por %p50, %p51
      %p54 = scmp.ne.s32.totalorder %s37, %s53
      %p55 = scmp.eq.s32.totalorder %s29, 0
      %p56 = por %p54, %p55
      %s58 = sadd.s32 %s57, 1
      %p61 = scmp.eq.s32.totalorder %s23, 1
      %p62 = scmp.ne.s32.totalorder %s57, %s59
      %p63 = scmp.eq.s32.totalorder %s23, 0
      %p64 = por %p62, %p63
      %p65 = scmp.ne.s32.totalorder %s57, %s59
      %p66 = scmp.eq.s32.totalorder %s28, 1
      %p67 = por %p65, %p66
      %p68 = scmp.ne.s32.totalorder %s59, %s60
      %p69 = scmp.eq.s32.totalorder %s28, 0
      %p70 = por %p68, %p69
      %p71 = scmp.ne.s32.totalorder %s59, %s60
      %p72 = scmp.eq.s32.totalorder %s29, 1
      %p73 = por %p71, %p72
      %p75 = scmp.ne.s32.totalorder %s60, %s74
      %p76 = scmp.eq.s32.totalorder %s29, 0
      %p77 = por %p75, %p76
      %s79 = sadd.s32 %s78, 1
      %p82 = scmp.eq.s32.totalorder %s23, 1
      %p83 = scmp.ne.s32.totalorder %s78, %s80
      %p84 = scmp.eq.s32.totalorder %s23, 0
      %p85 = por %p83, %p84
      %p86 = scmp.ne.s32.totalorder %s78, %s80
      %p87 = scmp.eq.s32.totalorder %s28, 1
      %p88 = por %p86, %p87
      %p89 = scmp.ne.s32.totalorder %s80, %s81
      %p90 = scmp.eq.s32.totalorder %s28, 0
      %p91 = por %p89, %p90
      %p92 = scmp.ne.s32.totalorder %s80, %s81
      %p93 = scmp.eq.s32.totalorder %s29, 1
      %p94 = por %p92, %p93
      %p96 = scmp.ne.s32.totalorder %s81, %s95
      %p97 = scmp.eq.s32.totalorder %s29, 0
      %p98 = por %p96, %p97
      %s100 = sadd.s32 %s99, 1
      %p103 = scmp.eq.s32.totalorder %s23, 1
      %p104 = scmp.ne.s32.totalorder %s99, %s101
      %p105 = scmp.eq.s32.totalorder %s23, 0
      %p106 = por %p104, %p105
      %p107 = scmp.ne.s32.totalorder %s99, %s101
      %p108 = scmp.eq.s32.totalorder %s28, 1
      %p109 = por %p107, %p108
      %p110 = scmp.ne.s32.totalorder %s101, %s102
      %p111 = scmp.eq.s32.totalorder %s28, 0
      %p112 = por %p110, %p111
      %p113 = scmp.ne.s32.totalorder %s101, %s102
      %p114 = scmp.eq.s32.totalorder %s29, 1
      %p115 = por %p113, %p114
      %p117 = scmp.ne.s32.totalorder %s102, %s116
      %p118 = scmp.eq.s32.totalorder %s29, 0
      %p119 = por %p117, %p118
      %s121 = sadd.s32 %s120, 1
      %p124 = scmp.eq.s32.totalorder %s23, 1
      %p125 = scmp.ne.s32.totalorder %s120, %s122
      %p126 = scmp.eq.s32.totalorder %s23, 0
      %p127 = por %p125, %p126
      %p128 = scmp.ne.s32.totalorder %s120, %s122
      %p129 = scmp.eq.s32.totalorder %s28, 1
      %p130 = por %p128, %p129
      %p131 = scmp.ne.s32.totalorder %s122, %s123
      %p132 = scmp.eq.s32.totalorder %s28, 0
      %p133 = por %p131, %p132
      %p134 = scmp.ne.s32.totalorder %s122, %s123
      %p135 = scmp.eq.s32.totalorder %s29, 1
      %p136 = por %p134, %p135
      %p138 = scmp.ne.s32.totalorder %s123, %s137
      %p139 = scmp.eq.s32.totalorder %s29, 0
      %p140 = por %p138, %p139
      %s141 = ssub.s32 %s23, %s30
      %p142 = scmp.eq.s32.totalorder %s141, 0
      %s144 = sadd.s32 %s143, 1
      %s145 = scalar_select %p142, %s143, %s144
      %p148 = pneg %p142
      %p149 = scmp.eq.s32.totalorder %s23, 1
      %p150 = por %p148, %p149
      %p151 = scmp.ne.s32.totalorder %s143, %s146
      %p152 = scmp.eq.s32.totalorder %s23, 0
      %p153 = por %p151, %p152
      %p154 = scmp.ne.s32.totalorder %s143, %s146
      %p155 = scmp.eq.s32.totalorder %s28, 1
      %p156 = por %p154, %p155
      %p157 = scmp.ne.s32.totalorder %s146, %s147
      %p158 = scmp.eq.s32.totalorder %s28, 0
      %p159 = por %p157, %p158
      %p160 = scmp.ne.s32.totalorder %s146, %s147
      %p161 = scmp.eq.s32.totalorder %s29, 1
      %p162 = por %p160, %p161
      %p164 = scmp.ne.s32.totalorder %s147, %s163
      %p165 = scmp.eq.s32.totalorder %s29, 0
      %p166 = por %p164, %p165
      %s167 = ssub.s32 %s23, %s30
      %p168 = scmp.eq.s32.totalorder %s167, 0
      %s170 = sadd.s32 %s169, 1
      %s171 = scalar_select %p168, %s169, %s170
      %p174 = pneg %p168
      %p175 = scmp.eq.s32.totalorder %s23, 1
      %p176 = por %p174, %p175
      %p177 = scmp.ne.s32.totalorder %s169, %s172
      %p178 = scmp.eq.s32.totalorder %s23, 0
      %p179 = por %p177, %p178
      %p180 = scmp.ne.s32.totalorder %s169, %s172
      %p181 = scmp.eq.s32.totalorder %s28, 1
      %p182 = por %p180, %p181
      %p183 = scmp.ne.s32.totalorder %s172, %s173
      %p184 = scmp.eq.s32.totalorder %s28, 0
      %p185 = por %p183, %p184
      %p186 = scmp.ne.s32.totalorder %s172, %s173
      %p187 = scmp.eq.s32.totalorder %s29, 1
      %p188 = por %p186, %p187
      %p190 = scmp.ne.s32.totalorder %s173, %s189
      %p191 = scmp.eq.s32.totalorder %s29, 0
      %p192 = por %p190, %p191
      %p193 = scmp.le.s32.totalorder 1, %s23
      %p194 = scmp.lt.s32.totalorder %s23, 3
      %p195 = pnand %p193, %p194
      %p196 = pneg %p195
      // Predicated region
      $region9: #{tpu_custom_call.1} parent=5 // pred_check
        _
      $region10: #{tpu_custom_call.1} parent=5 // pred_check_branch
        %198 = sbr.rel (%p195) target = $region12
      $region11: #{tpu_custom_call.1} parent=5 // pred_region
        %s199 = ssub.s32 %s23, 1
        // Predicated region
        $region13: #{tpu_custom_call.1} parent=11 // pred_check
          %p200 = pneg %p70
        $region14: #{tpu_custom_call.1} parent=11 // pred_check_branch
          %202 = sbr.rel (%p200) target = $region16
        $region15: #{tpu_custom_call.1} parent=11 // pred_region
          %204 = vsyncadd [#allocation6], 0
          %s205 = sshll.u32 %s1, 4
          %s206 = int_to_ptr.hbm [resolvable:$true] %s205
          %s207 = sshll.u32 [#allocation5], 4
          %s208 = int_to_ptr.vmem [resolvable:$true] %s207
          %213 = dma.hbm_to_vmem [thread:$0]  %s206, 512, %s208, [#allocation6], 128, 128, 8
        $region16: #{tpu_custom_call.1} parent=11 // pred_fallthru
          _
        // Predicated region
        $region17: #{tpu_custom_call.1} parent=11 // pred_check
          %p214 = pneg %p91
        $region18: #{tpu_custom_call.1} parent=11 // pred_check_branch
          %216 = sbr.rel (%p214) target = $region20
        $region19: #{tpu_custom_call.1} parent=11 // pred_region
          _
        $region20: #{tpu_custom_call.1} parent=11 // pred_fallthru
          _
        // Predicated region
        $region21: #{tpu_custom_call.1} parent=11 // pred_check
          %p217 = pneg %p112
        $region22: #{tpu_custom_call.1} parent=11 // pred_check_branch
          %219 = sbr.rel (%p217) target = $region24
        $region23: #{tpu_custom_call.1} parent=11 // pred_region
          %221 = vsyncadd [#allocation6], 0
          %s222 = sshll.u32 %s3, 4
          %s223 = int_to_ptr.hbm [resolvable:$true] %s222
          %s224 = sshll.u32 [#allocation7], 4
          %s225 = int_to_ptr.vmem [resolvable:$true] %s224
          %230 = dma.hbm_to_vmem [thread:$0]  %s223, 512, %s225, [#allocation6], 128, 128, 8
        $region24: #{tpu_custom_call.1} parent=11 // pred_fallthru
          _
        // Predicated region
        $region25: #{tpu_custom_call.1} parent=11 // pred_check
          %p231 = pneg %p133
        $region26: #{tpu_custom_call.1} parent=11 // pred_check_branch
          %233 = sbr.rel (%p231) target = $region28
        $region27: #{tpu_custom_call.1} parent=11 // pred_region
          _
        $region28: #{tpu_custom_call.1} parent=11 // pred_fallthru
          _
      $region12: #{tpu_custom_call.1} parent=5 // pred_fallthru
        _
      %p234 = scmp.lt.s32.totalorder %s23, 2
      // Predicated region
      $region29: #{tpu_custom_call.1} parent=5 // pred_check
        %p235 = pneg %p234
      $region30: #{tpu_custom_call.1} parent=5 // pred_check_branch
        %237 = sbr.rel (%p235) target = $region32
      $region31: #{tpu_custom_call.1} parent=5 // pred_region
        // Predicated region
        $region33: #{tpu_custom_call.1} parent=31 // pred_check
          %p238 = pneg %p43
        $region34: #{tpu_custom_call.1} parent=31 // pred_check_branch
          %240 = sbr.rel (%p238) target = $region36
        $region35: #{tpu_custom_call.1} parent=31 // pred_region
          %s241 = sand.u32 %s33, 1
          %s242 = scalar_lea.sflag [#allocation3], %s241
          %s243 = sand.u32 %s33, 1
          %s244 = smul.addr %s243, 8
          %s245 = scalar_lea.vmem [#allocation2], %s244
          %247 = vsyncadd %s242, 0
          %s248 = smul.addr %s23, 8
          %s249 = scalar_lea.hbm %s0, %s248
          %s251 = sshll.u32 %s249, 4
          %s252 = int_to_ptr.hbm [resolvable:$true] %s251
          %s253 = sshll.u32 %s245, 4
          %s254 = int_to_ptr.vmem [resolvable:$true] %s253
          %256 = dma.hbm_to_vmem [thread:$0]  %s252, 128, %s254, %s242
        $region36: #{tpu_custom_call.1} parent=31 // pred_fallthru
          _
      $region32: #{tpu_custom_call.1} parent=5 // pred_fallthru
        _
      %p257 = scmp.le.s32.totalorder 1, %s23
      %p258 = scmp.lt.s32.totalorder %s23, 3
      %p259 = pnand %p257, %p258
      %p260 = pneg %p259
      // Predicated region
      $region37: #{tpu_custom_call.1} parent=5 // pred_check
        _
      $region38: #{tpu_custom_call.1} parent=5 // pred_check_branch
        %262 = sbr.rel (%p259) target = $region40
      $region39: #{tpu_custom_call.1} parent=5 // pred_region
        %s263 = ssub.s32 %s23, 1
        %s264 = sand.u32 %s36, 1
        %s265 = scalar_lea.sflag [#allocation3], %s264
        %s266 = sand.u32 %s36, 1
        %s267 = smul.addr %s266, 8
        %s268 = scalar_lea.vmem [#allocation2], %s267
        // Predicated region
        $region41: #{tpu_custom_call.1} parent=39 // pred_check
          %p269 = pneg %p49
        $region42: #{tpu_custom_call.1} parent=39 // pred_check_branch
          %271 = sbr.rel (%p269) target = $region44
        $region43: #{tpu_custom_call.1} parent=39 // pred_region
          %273 = dma.done %s265, 128
        $region44: #{tpu_custom_call.1} parent=39 // pred_fallthru
          _
        // Predicated region
        $region45: #{tpu_custom_call.1} parent=39 // pred_check
          %p274 = pneg %p70
        $region46: #{tpu_custom_call.1} parent=39 // pred_check_branch
          %276 = sbr.rel (%p274) target = $region48
        $region47: #{tpu_custom_call.1} parent=39 // pred_region
          %278 = dma.done [#allocation6], 512
        $region48: #{tpu_custom_call.1} parent=39 // pred_fallthru
          _
        // Predicated region
        $region49: #{tpu_custom_call.1} parent=39 // pred_check
          %p279 = pneg %p112
        $region50: #{tpu_custom_call.1} parent=39 // pred_check_branch
          %281 = sbr.rel (%p279) target = $region52
        $region51: #{tpu_custom_call.1} parent=39 // pred_region
          %283 = dma.done [#allocation6], 512
        $region52: #{tpu_custom_call.1} parent=39 // pred_fallthru
          _
        %s284 = sand.u32 %s36, 1
        %s285 = scalar_lea.sflag [#allocation3], %s284
        %s286 = sand.u32 %s36, 1
        %s287 = smul.addr %s286, 8
        %s288 = scalar_lea.vmem [#allocation2], %s287
        %p289 = pneg %p49
        %p290 = pneg %p46
        %p291 = pneg %p70
        %p292 = pneg %p67
        %p293 = pneg %p91
        %p294 = pneg %p88
        %p295 = pneg %p112
        %p296 = pneg %p109
        %p297 = pneg %p133
        %p298 = pneg %p130
        %p299 = pneg %p159
        %p300 = pneg %p156
        %s301 = sand.u32 %s146, 1
        %s302 = scalar_lea.sflag [#allocation4], %s301
        %s303 = sand.u32 %s146, 1
        %s304 = smul.addr %s303, 8
        %s305 = scalar_lea.vmem [#allocation8], %s304
        %p306 = pneg %p185
        %p307 = pneg %p182
        %s308 = sand.u32 %s172, 1
        %s309 = scalar_lea.sflag [#allocation10], %s308
        %s310 = sand.u32 %s172, 1
        %s311 = smul.addr %s310, 8
        %s312 = scalar_lea.vmem [#allocation9], %s311
        %v313 = vld [vmem:[%s268] sm:$0xff]
        %v314 = vld [vmem:[#allocation5] sm:$0xff]
        %v315 = vld [vmem:[#allocation5 + $0x8] sm:$0xff]
        %v316 = vld [vmem:[#allocation5 + $0x10] sm:$0xff]
        %v317 = vld [vmem:[#allocation5 + $0x18] sm:$0xff]
        %v318 = vld [vmem:[%s2] sm:$0x1]
        %v320 = vperm.slane %v318, 0
        %vm322 = vcmask 261120
        %v324 = vsel %vm322, %v313, 0
        %326 = vmatpush.msra.mxu0 0.0
        %327 = vmatpush.msra.mxu0 0.0
        %328 = vmatpush.msra.mxu0 0.0
        %329 = vmatpush.msra.mxu0 0.0
        %330 = vmatpush.msra.mxu0 0.0
        %331 = vmatpush.msra.mxu0 0.0
        %332 = vmatpush.msra.mxu0 0.0
        %333 = vmatpush.msra.mxu0 0.0
        %334 = vmatpush.msra.mxu0 0.0
        %335 = vmatpush.msra.mxu0 0.0
        %336 = vmatpush.msra.mxu0 0.0
        %337 = vmatpush.msra.mxu0 0.0
        %338 = vmatpush.msra.mxu0 %v317
        %339 = vmatpush.msra.mxu0 %v316
        %340 = vmatpush.msra.mxu0 %v315
        %341 = vmatpush.msra.mxu0 %v314
        %342 = vmatmul.f32.gmra.mxu0 %v324
        %v343 = vpop.f32.mrf.mxu0
        %v344 = vadd.f32 %v320, %v343
        %345 = vdwg.mxu0
        %v346 = vmul.f32 %v344, 0.35355338
        %v347 = vld [vmem:[#allocation7] sm:$0xff]
        %v348 = vld [vmem:[#allocation7 + $0x8] sm:$0xff]
        %v349 = vld [vmem:[#allocation7 + $0x10] sm:$0xff]
        %v350 = vld [vmem:[#allocation7 + $0x18] sm:$0xff]
        %v351 = vld [vmem:[%s4] sm:$0x1]
        %353 = vrot.lane.b32.xlu0 %v344, 96
        %v354 = vpop.permute.xlu0 %353
        %vm355 = vcmask 64512
        %v357 = vsel %vm355, %v346, 0
        %v359 = vsel %vm355, %v354, 0
        %361 = vmatpush.xpose.msra.mxu0 0.0
        %362 = vmatpush.xpose.msra.mxu0 0.0
        %363 = vmatpush.xpose.msra.mxu0 0.0
        %364 = vmatpush.xpose.msra.mxu0 0.0
        %365 = vmatpush.xpose.msra.mxu0 0.0
        %366 = vmatpush.xpose.msra.mxu0 0.0
        %367 = vmatpush.xpose.msra.mxu0 0.0
        %368 = vmatpush.xpose.msra.mxu0 0.0
        %369 = vmatpush.xpose.msra.mxu0 0.0
        %370 = vmatpush.xpose.msra.mxu0 0.0
        %371 = vmatpush.xpose.msra.mxu0 0.0
        %372 = vmatpush.xpose.msra.mxu0 0.0
        %373 = vmatpush.xpose.msra.mxu0 0.0
        %374 = vmatpush.xpose.msra.mxu0 0.0
        %375 = vmatpush.xpose.msra.mxu0 0.0
        %376 = vmatpush.xpose.msra.mxu0 %v359
        %377 = vmatmul.f32.gmra.mxu0 %v357
        %v378 = vpop.f32.mrf.mxu0
        %v379 = vadd.f32 0.0, %v378
        %380 = vdwg.mxu0
        %v381 = vsel %vm355, %v379, -inf
        %382 = vmax.xlane.f32.xlu0 %v381
        %v383 = vpop.xlane.xlu0 %382
        %v384 = vsub.f32 %v379, %v383
        %v385 = vmul.f32 %v384, 1.442695
        %v386 = vpow.pop %v385
        %v387 = vsel %vm355, %v386, 0.0
        %388 = vadd.xlane.f32.xlu0 %v387
        %v389 = vpop.xlane.xlu0 %388
        %v390 = vrcp.pop %v389
        %v391 = vmul.f32 %v389, %v390
        %v392 = vsub.f32 1.0, %v391
        %v393 = vmul.f32 %v390, %v392
        %v394 = vadd.f32 %v390, %v393
        %vm395 = vweird.f32 %v389
        %vm396 = vweird.f32 %v390
        %vm397 = vmor %vm395, %vm396
        %v398 = vsel %vm397, %v390, %v394
        %v399 = vand.u32 2147483647, %v389
        %vm400 = vcmp.eq.f32.partialorder %v399, 8.507059e+37
        %v401 = vand.u32 %v389, 2147483648
        %v402 = vor.u32 1.1754944e-38, %v401
        %v403 = vsel %vm400, %v402, %v398
        %v404 = vmul.f32 %v386, %v403
        %405 = vrot.lane.b32.xlu0 %v344, 64
        %v406 = vpop.permute.xlu0 %405
        %v409 = vsel %vm355, %v404, 0
        %411 = vmatpush.msra.mxu0 0.0
        %412 = vmatpush.msra.mxu0 0.0
        %413 = vmatpush.msra.mxu0 0.0
        %414 = vmatpush.msra.mxu0 0.0
        %415 = vmatpush.msra.mxu0 0.0
        %416 = vmatpush.msra.mxu0 0.0
        %417 = vmatpush.msra.mxu0 0.0
        %418 = vmatpush.msra.mxu0 0.0
        %419 = vmatpush.msra.mxu0 0.0
        %420 = vmatpush.msra.mxu0 0.0
        %421 = vmatpush.msra.mxu0 0.0
        %422 = vmatpush.msra.mxu0 0.0
        %423 = vmatpush.msra.mxu0 0.0
        %424 = vmatpush.msra.mxu0 0.0
        %425 = vmatpush.msra.mxu0 0.0
        %426 = vmatpush.msra.mxu0 %v406
        %427 = vmatmul.f32.gmra.mxu0 %v409
        %v428 = vpop.f32.mrf.mxu0
        %v429 = vadd.f32 0.0, %v428
        %430 = vdwg.mxu0
        %431 = vrot.lane.b32.xlu0 %v346, 120
        %v432 = vpop.permute.xlu0 %431
        %433 = vrot.lane.b32.xlu0 %v344, 88
        %v434 = vpop.permute.xlu0 %433
        %v435 = vsel %vm355, %v432, 0
        %v437 = vsel %vm355, %v434, 0
        %439 = vmatpush.xpose.msra.mxu0 0.0
        %440 = vmatpush.xpose.msra.mxu0 0.0
        %441 = vmatpush.xpose.msra.mxu0 0.0
        %442 = vmatpush.xpose.msra.mxu0 0.0
        %443 = vmatpush.xpose.msra.mxu0 0.0
        %444 = vmatpush.xpose.msra.mxu0 0.0
        %445 = vmatpush.xpose.msra.mxu0 0.0
        %446 = vmatpush.xpose.msra.mxu0 0.0
        %447 = vmatpush.xpose.msra.mxu0 0.0
        %448 = vmatpush.xpose.msra.mxu0 0.0
        %449 = vmatpush.xpose.msra.mxu0 0.0
        %450 = vmatpush.xpose.msra.mxu0 0.0
        %451 = vmatpush.xpose.msra.mxu0 0.0
        %452 = vmatpush.xpose.msra.mxu0 0.0
        %453 = vmatpush.xpose.msra.mxu0 0.0
        %454 = vmatpush.xpose.msra.mxu0 %v437
        %455 = vmatmul.f32.gmra.mxu0 %v435
        %v456 = vpop.f32.mrf.mxu0
        %v457 = vadd.f32 0.0, %v456
        %458 = vdwg.mxu0
        %v459 = vadd.f32 %v379, %v457
        %v460 = vsel %vm355, %v457, -inf
        %461 = vmax.xlane.f32.xlu0 %v460
        %v462 = vpop.xlane.xlu0 %461
        %v463 = vsub.f32 %v457, %v462
        %v464 = vmul.f32 %v463, 1.442695
        %v465 = vpow.pop %v464
        %v466 = vsel %vm355, %v465, 0.0
        %467 = vadd.xlane.f32.xlu0 %v466
        %v468 = vpop.xlane.xlu0 %467
        %v469 = vrcp.pop %v468
        %v470 = vmul.f32 %v468, %v469
        %v471 = vsub.f32 1.0, %v470
        %v472 = vmul.f32 %v469, %v471
        %v473 = vadd.f32 %v469, %v472
        %vm474 = vweird.f32 %v468
        %vm475 = vweird.f32 %v469
        %vm476 = vmor %vm474, %vm475
        %v477 = vsel %vm476, %v469, %v473
        %v478 = vand.u32 2147483647, %v468
        %vm479 = vcmp.eq.f32.partialorder %v478, 8.507059e+37
        %v480 = vand.u32 %v468, 2147483648
        %v481 = vor.u32 1.1754944e-38, %v480
        %v482 = vsel %vm479, %v481, %v477
        %v483 = vmul.f32 %v465, %v482
        %484 = vrot.lane.b32.xlu0 %v344, 56
        %v485 = vpop.permute.xlu0 %484
        %v488 = vsel %vm355, %v483, 0
        %490 = vmatpush.msra.mxu0 0.0
        %491 = vmatpush.msra.mxu0 0.0
        %492 = vmatpush.msra.mxu0 0.0
        %493 = vmatpush.msra.mxu0 0.0
        %494 = vmatpush.msra.mxu0 0.0
        %495 = vmatpush.msra.mxu0 0.0
        %496 = vmatpush.msra.mxu0 0.0
        %497 = vmatpush.msra.mxu0 0.0
        %498 = vmatpush.msra.mxu0 0.0
        %499 = vmatpush.msra.mxu0 0.0
        %500 = vmatpush.msra.mxu0 0.0
        %501 = vmatpush.msra.mxu0 0.0
        %502 = vmatpush.msra.mxu0 0.0
        %503 = vmatpush.msra.mxu0 0.0
        %504 = vmatpush.msra.mxu0 0.0
        %505 = vmatpush.msra.mxu0 %v485
        %506 = vmatmul.f32.gmra.mxu0 %v488
        %v507 = vpop.f32.mrf.mxu0
        %v508 = vadd.f32 0.0, %v507
        %509 = vdwg.mxu0
        %510 = vrot.lane.b32.xlu0 %v346, 112
        %v511 = vpop.permute.xlu0 %510
        %512 = vrot.lane.b32.xlu0 %v344, 80
        %v513 = vpop.permute.xlu0 %512
        %v514 = vsel %vm355, %v511, 0
        %v516 = vsel %vm355, %v513, 0
        %518 = vmatpush.xpose.msra.mxu0 0.0
        %519 = vmatpush.xpose.msra.mxu0 0.0
        %520 = vmatpush.xpose.msra.mxu0 0.0
        %521 = vmatpush.xpose.msra.mxu0 0.0
        %522 = vmatpush.xpose.msra.mxu0 0.0
        %523 = vmatpush.xpose.msra.mxu0 0.0
        %524 = vmatpush.xpose.msra.mxu0 0.0
        %525 = vmatpush.xpose.msra.mxu0 0.0
        %526 = vmatpush.xpose.msra.mxu0 0.0
        %527 = vmatpush.xpose.msra.mxu0 0.0
        %528 = vmatpush.xpose.msra.mxu0 0.0
        %529 = vmatpush.xpose.msra.mxu0 0.0
        %530 = vmatpush.xpose.msra.mxu0 0.0
        %531 = vmatpush.xpose.msra.mxu0 0.0
        %532 = vmatpush.xpose.msra.mxu0 0.0
        %533 = vmatpush.xpose.msra.mxu0 %v516
        %534 = vmatmul.f32.gmra.mxu0 %v514
        %v535 = vpop.f32.mrf.mxu0
        %v536 = vadd.f32 0.0, %v535
        %537 = vdwg.mxu0
        %v538 = vadd.f32 %v459, %v536
        %v539 = vsel %vm355, %v536, -inf
        %540 = vmax.xlane.f32.xlu0 %v539
        %v541 = vpop.xlane.xlu0 %540
        %v542 = vsub.f32 %v536, %v541
        %v543 = vmul.f32 %v542, 1.442695
        %v544 = vpow.pop %v543
        %v545 = vsel %vm355, %v544, 0.0
        %546 = vadd.xlane.f32.xlu0 %v545
        %v547 = vpop.xlane.xlu0 %546
        %v548 = vrcp.pop %v547
        %v549 = vmul.f32 %v547, %v548
        %v550 = vsub.f32 1.0, %v549
        %v551 = vmul.f32 %v548, %v550
        %v552 = vadd.f32 %v548, %v551
        %vm553 = vweird.f32 %v547
        %vm554 = vweird.f32 %v548
        %vm555 = vmor %vm553, %vm554
        %v556 = vsel %vm555, %v548, %v552
        %v557 = vand.u32 2147483647, %v547
        %vm558 = vcmp.eq.f32.partialorder %v557, 8.507059e+37
        %v559 = vand.u32 %v547, 2147483648
        %v560 = vor.u32 1.1754944e-38, %v559
        %v561 = vsel %vm558, %v560, %v556
        %v562 = vmul.f32 %v544, %v561
        %563 = vrot.lane.b32.xlu0 %v344, 48
        %v564 = vpop.permute.xlu0 %563
        %v567 = vsel %vm355, %v562, 0
        %569 = vmatpush.msra.mxu0 0.0
        %570 = vmatpush.msra.mxu0 0.0
        %571 = vmatpush.msra.mxu0 0.0
        %572 = vmatpush.msra.mxu0 0.0
        %573 = vmatpush.msra.mxu0 0.0
        %574 = vmatpush.msra.mxu0 0.0
        %575 = vmatpush.msra.mxu0 0.0
        %576 = vmatpush.msra.mxu0 0.0
        %577 = vmatpush.msra.mxu0 0.0
        %578 = vmatpush.msra.mxu0 0.0
        %579 = vmatpush.msra.mxu0 0.0
        %580 = vmatpush.msra.mxu0 0.0
        %581 = vmatpush.msra.mxu0 0.0
        %582 = vmatpush.msra.mxu0 0.0
        %583 = vmatpush.msra.mxu0 0.0
        %584 = vmatpush.msra.mxu0 %v564
        %585 = vmatmul.f32.gmra.mxu0 %v567
        %v586 = vpop.f32.mrf.mxu0
        %v587 = vadd.f32 0.0, %v586
        %588 = vdwg.mxu0
        %589 = vrot.lane.b32.xlu0 %v346, 104
        %v590 = vpop.permute.xlu0 %589
        %591 = vrot.lane.b32.xlu0 %v344, 72
        %v592 = vpop.permute.xlu0 %591
        %v593 = vsel %vm355, %v590, 0
        %v595 = vsel %vm355, %v592, 0
        %597 = vmatpush.xpose.msra.mxu0 0.0
        %598 = vmatpush.xpose.msra.mxu0 0.0
        %599 = vmatpush.xpose.msra.mxu0 0.0
        %600 = vmatpush.xpose.msra.mxu0 0.0
        %601 = vmatpush.xpose.msra.mxu0 0.0
        %602 = vmatpush.xpose.msra.mxu0 0.0
        %603 = vmatpush.xpose.msra.mxu0 0.0
        %604 = vmatpush.xpose.msra.mxu0 0.0
        %605 = vmatpush.xpose.msra.mxu0 0.0
        %606 = vmatpush.xpose.msra.mxu0 0.0
        %607 = vmatpush.xpose.msra.mxu0 0.0
        %608 = vmatpush.xpose.msra.mxu0 0.0
        %609 = vmatpush.xpose.msra.mxu0 0.0
        %610 = vmatpush.xpose.msra.mxu0 0.0
        %611 = vmatpush.xpose.msra.mxu0 0.0
        %612 = vmatpush.xpose.msra.mxu0 %v595
        %613 = vmatmul.f32.gmra.mxu0 %v593
        %v614 = vpop.f32.mrf.mxu0
        %v615 = vadd.f32 0.0, %v614
        %616 = vdwg.mxu0
        %v617 = vadd.f32 %v538, %v615
        %v618 = vsel %vm355, %v615, -inf
        %619 = vmax.xlane.f32.xlu0 %v618
        %v620 = vpop.xlane.xlu0 %619
        %v621 = vsub.f32 %v615, %v620
        %v622 = vmul.f32 %v621, 1.442695
        %v623 = vpow.pop %v622
        %v624 = vsel %vm355, %v623, 0.0
        %625 = vadd.xlane.f32.xlu0 %v624
        %v626 = vpop.xlane.xlu0 %625
        %v627 = vrcp.pop %v626
        %v628 = vmul.f32 %v626, %v627
        %v629 = vsub.f32 1.0, %v628
        %v630 = vmul.f32 %v627, %v629
        %v631 = vadd.f32 %v627, %v630
        %vm632 = vweird.f32 %v626
        %vm633 = vweird.f32 %v627
        %vm634 = vmor %vm632, %vm633
        %v635 = vsel %vm634, %v627, %v631
        %v636 = vand.u32 2147483647, %v626
        %vm637 = vcmp.eq.f32.partialorder %v636, 8.507059e+37
        %v638 = vand.u32 %v626, 2147483648
        %v639 = vor.u32 1.1754944e-38, %v638
        %v640 = vsel %vm637, %v639, %v635
        %v641 = vmul.f32 %v623, %v640
        %642 = vrot.lane.b32.xlu0 %v344, 40
        %v643 = vpop.permute.xlu0 %642
        %v646 = vsel %vm355, %v641, 0
        %648 = vmatpush.msra.mxu0 0.0
        %649 = vmatpush.msra.mxu0 0.0
        %650 = vmatpush.msra.mxu0 0.0
        %651 = vmatpush.msra.mxu0 0.0
        %652 = vmatpush.msra.mxu0 0.0
        %653 = vmatpush.msra.mxu0 0.0
        %654 = vmatpush.msra.mxu0 0.0
        %655 = vmatpush.msra.mxu0 0.0
        %656 = vmatpush.msra.mxu0 0.0
        %657 = vmatpush.msra.mxu0 0.0
        %658 = vmatpush.msra.mxu0 0.0
        %659 = vmatpush.msra.mxu0 0.0
        %660 = vmatpush.msra.mxu0 0.0
        %661 = vmatpush.msra.mxu0 0.0
        %662 = vmatpush.msra.mxu0 0.0
        %663 = vmatpush.msra.mxu0 %v643
        %664 = vmatmul.f32.gmra.mxu0 %v646
        %v665 = vpop.f32.mrf.mxu0
        %v666 = vadd.f32 0.0, %v665
        %667 = vdwg.mxu0
        %669 = vrot.lane.b32.xlu0 %v508, 8
        %v670 = vpop.permute.xlu0 %669
        %673 = vrot.lane.b32.xlu0 %v587, 16
        %v674 = vpop.permute.xlu0 %673
        %677 = vrot.lane.b32.xlu0 %v666, 24
        %v678 = vpop.permute.xlu0 %677
        %v680 = vsel %vm355, %v429, %v670
        %vm681 = vcmask 130048
        %v682 = vsel %vm681, %v680, %v674
        %vm683 = vcmask 195584
        %v684 = vsel %vm683, %v682, %v678
        %v686 = vperm.slane %v351, 0
        %v689 = vsel %vm322, %v684, 0
        %691 = vmatpush.msra.mxu0 0.0
        %692 = vmatpush.msra.mxu0 0.0
        %693 = vmatpush.msra.mxu0 0.0
        %694 = vmatpush.msra.mxu0 0.0
        %695 = vmatpush.msra.mxu0 0.0
        %696 = vmatpush.msra.mxu0 0.0
        %697 = vmatpush.msra.mxu0 0.0
        %698 = vmatpush.msra.mxu0 0.0
        %699 = vmatpush.msra.mxu0 0.0
        %700 = vmatpush.msra.mxu0 0.0
        %701 = vmatpush.msra.mxu0 0.0
        %702 = vmatpush.msra.mxu0 0.0
        %703 = vmatpush.msra.mxu0 %v350
        %704 = vmatpush.msra.mxu0 %v349
        %705 = vmatpush.msra.mxu0 %v348
        %706 = vmatpush.msra.mxu0 %v347
        %707 = vmatmul.f32.gmra.mxu0 %v689
        %v708 = vpop.f32.mrf.mxu0
        %v709 = vadd.f32 %v686, %v708
        %710 = vdwg.mxu0
        %711 = vst.msk [vmem:[%s305] sm:$0xff] %vm322, %v709
        %v712 = vmul.f32 %v617, 0.25
        %713 = vst.msk [vmem:[%s312] sm:$0xff] %vm355, %v712
        %s714 = sand.u32 %s146, 1
        %s715 = scalar_lea.sflag [#allocation4], %s714
        %s716 = sand.u32 %s146, 1
        %s717 = smul.addr %s716, 8
        %s718 = scalar_lea.vmem [#allocation8], %s717
        %s719 = sand.u32 %s172, 1
        %s720 = scalar_lea.sflag [#allocation10], %s719
        %s721 = sand.u32 %s172, 1
        %s722 = smul.addr %s721, 8
        %s723 = scalar_lea.vmem [#allocation9], %s722
        // Predicated region
        $region53: #{tpu_custom_call.1} parent=39 // pred_check
          %p724 = pneg %p156
        $region54: #{tpu_custom_call.1} parent=39 // pred_check_branch
          %726 = sbr.rel (%p724) target = $region56
        $region55: #{tpu_custom_call.1} parent=39 // pred_region
          %728 = vsyncadd %s715, 0
          %s729 = smul.addr %s28, 8
          %s730 = scalar_lea.hbm %s5, %s729
          %s732 = sshll.u32 %s718, 4
          %s733 = int_to_ptr.vmem [resolvable:$true] %s732
          %s734 = sshll.u32 %s730, 4
          %s735 = int_to_ptr.hbm [resolvable:$true] %s734
          %737 = dma.vmem_to_hbm [thread:$0]  %s733, 128, %s735, %s715
        $region56: #{tpu_custom_call.1} parent=39 // pred_fallthru
          _
        // Predicated region
        $region57: #{tpu_custom_call.1} parent=39 // pred_check
          %p738 = pneg %p182
        $region58: #{tpu_custom_call.1} parent=39 // pred_check_branch
          %740 = sbr.rel (%p738) target = $region60
        $region59: #{tpu_custom_call.1} parent=39 // pred_region
          %742 = vsyncadd %s720, 0
          %s743 = smul.addr %s28, 8
          %s744 = scalar_lea.hbm %s6, %s743
          %s746 = sshll.u32 %s723, 4
          %s747 = int_to_ptr.vmem [resolvable:$true] %s746
          %s748 = sshll.u32 %s744, 4
          %s749 = int_to_ptr.hbm [resolvable:$true] %s748
          %751 = dma.vmem_to_hbm [thread:$0]  %s747, 128, %s749, %s720
        $region60: #{tpu_custom_call.1} parent=39 // pred_fallthru
          _
      $region40: #{tpu_custom_call.1} parent=5 // pred_fallthru
        _
      %p752 = scmp.le.s32.totalorder 2, %s23
      // Predicated region
      $region61: #{tpu_custom_call.1} parent=5 // pred_check
        %p753 = pneg %p752
      $region62: #{tpu_custom_call.1} parent=5 // pred_check_branch
        %755 = sbr.rel (%p753) target = $region64
      $region63: #{tpu_custom_call.1} parent=5 // pred_region
        %s756 = ssub.s32 %s23, 2
        // Predicated region
        $region65: #{tpu_custom_call.1} parent=63 // pred_check
          %p757 = pneg %p162
        $region66: #{tpu_custom_call.1} parent=63 // pred_check_branch
          %759 = sbr.rel (%p757) target = $region68
        $region67: #{tpu_custom_call.1} parent=63 // pred_region
          %s760 = sand.u32 %s147, 1
          %s761 = scalar_lea.sflag [#allocation4], %s760
          %s762 = sand.u32 %s147, 1
          %s763 = smul.addr %s762, 8
          %s764 = scalar_lea.vmem [#allocation8], %s763
          %766 = dma.done %s761, 128
        $region68: #{tpu_custom_call.1} parent=63 // pred_fallthru
          _
        // Predicated region
        $region69: #{tpu_custom_call.1} parent=63 // pred_check
          %p767 = pneg %p188
        $region70: #{tpu_custom_call.1} parent=63 // pred_check_branch
          %769 = sbr.rel (%p767) target = $region72
        $region71: #{tpu_custom_call.1} parent=63 // pred_region
          %s770 = sand.u32 %s173, 1
          %s771 = scalar_lea.sflag [#allocation10], %s770
          %s772 = sand.u32 %s173, 1
          %s773 = smul.addr %s772, 8
          %s774 = scalar_lea.vmem [#allocation9], %s773
          %776 = dma.done %s771, 128
        $region72: #{tpu_custom_call.1} parent=63 // pred_fallthru
          _
      $region64: #{tpu_custom_call.1} parent=5 // pred_fallthru
        _
    $region6: #{tpu_custom_call.1} parent=1 // loop_footer
      %s27 = sadd.s32 1, %s23
    $region7: #{tpu_custom_call.1} parent=1 // loop_footer_branch
      %22 = sbr.rel target = $region3
    $region8: #{tpu_custom_call.1} parent=1 // loop_exit
      _
    %777 = vsyncpa [#allocation3], 1
    %s778 = scalar_lea.sflag [#allocation3], 1
    %779 = vsyncpa %s778, 1
    %780 = vsyncpa [#allocation6], 1
    %781 = vsyncpa [#allocation4], 1
    %s782 = scalar_lea.sflag [#allocation4], 1
    %783 = vsyncpa %s782, 1
    %784 = vsyncpa [#allocation10], 1
    %s785 = scalar_lea.sflag [#allocation10], 1
    %786 = vsyncpa %s785, 1

</llo_original>
